<compile_context>
chip_gen: v7x
topology: tpu7x:2x2x1
jax: 0.10.0
libtpu: 0.0.40
codegen_flags: <defaults>
</compile_context>

<pallas_src>
import jax
import jax.numpy as jnp
from jax.experimental import pallas as pl
from jax.experimental.pallas import tpu as pltpu

EPS = 1e-5

# Transposed-conv tap map (k=4, s=2, p=1), per output parity / neighbourhood tap:
#   output row 2p+a uses input row p+(th-1) through kernel row _KH[a][th]
#   output col 2q+b uses input col q+(tw-1) through kernel col _KW[b][tw]
# (None = that neighbourhood tap does not contribute to that parity.)
_KH = ((3, 1, None), (None, 2, 0))
_KW = ((3, 1, None), (None, 2, 0))


def _conv_stats_kernel(lhs_ref, w_ref, out_ref, stats_ref):
    """Pass 1: raw transposed conv for one row tile + per-tile sum / sumsq."""
    acc = jnp.dot(lhs_ref[...], w_ref[...], preferred_element_type=jnp.float32)
    out_ref[...] = acc
    s = acc.sum(axis=0, keepdims=True)            # (1, 4*Cout)
    ss = (acc * acc).sum(axis=0, keepdims=True)   # (1, 4*Cout)
    stats_ref[0] = jnp.concatenate([s, ss], axis=0)


def _bn_relu_kernel(x_ref, scale_ref, shift_ref, o_ref):
    """Pass 2: y = relu(x * scale + shift); x aliases o (in-place)."""
    o_ref[...] = jnp.maximum(x_ref[...] * scale_ref[...] + shift_ref[...], 0.0)


def _round_up(x, m):
    return (x + m - 1) // m * m


def upsample_unit_forward(x_nchw, w, b, gamma, beta, eps=EPS, tm=256):
    """ConvTranspose2d(4,2,1) -> BatchNorm2d (train stats) -> ReLU.

    x_nchw: (N, Cin, H, W); w: (Cin, Cout, 4, 4) (PyTorch layout);
    b/gamma/beta: (Cout,).  Returns (N, Cout, 2H, 2W) float32.
    """
    N, Cin, H, W = x_nchw.shape
    Cout = w.shape[1]
    Kc = 9 * Cin            # im2col contraction dim (W-independent)
    Co4 = 4 * Cout          # output lanes, order (a, b, cout), cout fastest
    M = N * H * W

    tm = _round_up(max(16, min(tm, _round_up(M, 16))), 16)
    Mp = _round_up(M, tm)
    ntiles = Mp // tm

    # ---- im2col of the 3x3 neighbourhood (zero padded), 9 static slices.
    # bf16 MXU operand; padded rows are zero so they do not pollute BN stats.
    x_nhwc = jnp.transpose(x_nchw, (0, 2, 3, 1)).astype(jnp.bfloat16)
    xpad = jnp.pad(x_nhwc, ((0, 0), (1, 1), (1, 1), (0, 0)))
    patches = jnp.concatenate(
        [xpad[:, th:th + H, tw:tw + W, :] for th in range(3) for tw in range(3)],
        axis=-1)                                   # (N, H, W, 9*Cin)
    lhs = patches.reshape(M, Kc)
    if Mp > M:
        lhs = jnp.pad(lhs, ((0, Mp - M), (0, 0)))

    # ---- dense W-independent weight (9*Cin, 4*Cout); zeros for unused taps.
    # TODO(synk): for very large Cin, split into 4 per-parity (4*Cin, Cout)
    # matmuls to recover the 2.25x FLOP overhead of the shared 3x3 patch.
    w32 = w.astype(jnp.float32)
    blocks = []
    for th in range(3):
        for tw in range(3):
            cols = []
            for a in range(2):
                for bb in range(2):
                    kh, kw = _KH[a][th], _KW[bb][tw]
                    if kh is None or kw is None:
                        cols.append(jnp.zeros((Cin, Cout), jnp.float32))
                    else:
                        cols.append(w32[:, :, kh, kw])
            blocks.append(jnp.concatenate(cols, axis=1))      # (Cin, 4*Cout)
    wmat = jnp.concatenate(blocks, axis=0).astype(jnp.bfloat16)  # (Kc, Co4)

    # Conv bias intentionally NOT applied: training-mode BatchNorm subtracts
    # the batch mean, so the per-channel bias cancels exactly.
    del b

    # ---- pass 1: conv + per-tile partial statistics (parallel row tiles) ----
    conv_raw, stats = pl.pallas_call(
        _conv_stats_kernel,
        grid=(ntiles,),
        in_specs=[
            pl.BlockSpec((tm, Kc), lambda i: (i, 0)),
            pl.BlockSpec((Kc, Co4), lambda i: (0, 0)),       # resident weight
        ],
        out_specs=(
            pl.BlockSpec((tm, Co4), lambda i: (i, 0)),
            pl.BlockSpec((1, 2, Co4), lambda i: (i, 0, 0)),
        ),
        out_shape=(
            jax.ShapeDtypeStruct((Mp, Co4), jnp.float32),
            jax.ShapeDtypeStruct((ntiles, 2, Co4), jnp.float32),
        ),
        compiler_params=pltpu.CompilerParams(
            dimension_semantics=("parallel",)),
    )(lhs, wmat)

    # ---- tiny cross-tile reduction + BN scale/shift folding (wrapper XLA) ---
    s_lane = stats[:, 0, :].sum(axis=0)                   # (Co4,)
    ss_lane = stats[:, 1, :].sum(axis=0)
    s_c = s_lane.reshape(4, Cout).sum(axis=0)              # per-channel sum
    ss_c = ss_lane.reshape(4, Cout).sum(axis=0)
    cnt = jnp.float32(N * 4 * H * W)                       # N * 2H * 2W
    mean = s_c / cnt
    # TODO(synk): E[x^2]-E[x]^2 can lose precision on very large feature maps;
    # switch to a shifted-mean / Welford per-tile variance if that matters.
    var = jnp.maximum(ss_c / cnt - mean * mean, 0.0)
    scale_c = gamma.astype(jnp.float32) * jax.lax.rsqrt(var + eps)
    shift_c = beta.astype(jnp.float32) - mean * scale_c
    scale_l = jnp.tile(scale_c, 4).reshape(1, Co4)         # lane order (a,b,c)
    shift_l = jnp.tile(shift_c, 4).reshape(1, Co4)

    # ---- pass 2: normalize + ReLU, in place over the raw conv buffer --------
    y_flat = pl.pallas_call(
        _bn_relu_kernel,
        grid=(ntiles,),
        in_specs=[
            pl.BlockSpec((tm, Co4), lambda i: (i, 0)),
            pl.BlockSpec((1, Co4), lambda i: (0, 0)),
            pl.BlockSpec((1, Co4), lambda i: (0, 0)),
        ],
        out_specs=pl.BlockSpec((tm, Co4), lambda i: (i, 0)),
        out_shape=jax.ShapeDtypeStruct((Mp, Co4), jnp.float32),
        input_output_aliases={0: 0},
        compiler_params=pltpu.CompilerParams(
            dimension_semantics=("parallel",)),
    )(conv_raw, scale_l, shift_l)

    # ---- reassemble NCHW (single relayout of the upsampled tensor) ----------
    # y_flat[(n*H+p)*W+q, (a*2+b)*Cout+c] == y[n, c, 2p+a, 2q+b]
    # TODO(synk): if the consumer accepts this NHWC-like layout, drop this
    # transpose (it is a full relayout of the 4x-upsampled tensor).
    y = y_flat[:M].reshape(N, H, W, 2, 2, Cout)
    y = jnp.transpose(y, (0, 5, 1, 3, 2, 4))
    return y.reshape(N, Cout, 2 * H, 2 * W)


def reference_forward(x_nchw, w, b, gamma, beta, eps=EPS):
    """Pure-JAX reference (conv_transpose as lhs-dilated conv) for validation."""
    x = jnp.transpose(x_nchw, (0, 2, 3, 1)).astype(jnp.float32)
    w_k = jnp.transpose(w, (2, 3, 0, 1)).astype(jnp.float32)
    w_flip = w_k[::-1, ::-1]
    y = jax.lax.conv_general_dilated(
        x, w_flip, window_strides=(1, 1), padding=[(2, 2), (2, 2)],
        lhs_dilation=(2, 2), rhs_dilation=(1, 1),
        dimension_numbers=("NHWC", "HWIO", "NHWC"))
    y = y + b.reshape(1, 1, 1, -1)
    mean = y.mean(axis=(0, 1, 2), keepdims=True)
    var = ((y - mean) ** 2).mean(axis=(0, 1, 2), keepdims=True)
    y = (y - mean) * jax.lax.rsqrt(var + eps) * gamma.reshape(1, 1, 1, -1) \
        + beta.reshape(1, 1, 1, -1)
    y = jnp.maximum(y, 0.0)
    return jnp.transpose(y, (0, 3, 1, 2))


if __name__ == "__main__":
    N, Cin, Cout, H, W = 2, 4, 8, 16, 16

    key = jax.random.PRNGKey(0)
    kx, kw, kb, kg, kbe = jax.random.split(key, 5)

    x = jax.random.normal(kx, (N, Cin, H, W), jnp.float32)
    # ConvTranspose2d params: weight (Cin, Cout, 4, 4), bias (Cout,)
    w = 0.1 * jax.random.normal(kw, (Cin, Cout, 4, 4), jnp.float32)
    b = 0.1 * jax.random.normal(kb, (Cout,), jnp.float32)
    # BatchNorm2d params
    gamma = 1.0 + 0.1 * jax.random.normal(kg, (Cout,), jnp.float32)
    beta = 0.1 * jax.random.normal(kbe, (Cout,), jnp.float32)

    fwd = jax.jit(upsample_unit_forward, static_argnames=("eps", "tm"))
    out = fwd(x, w, b, gamma, beta, tm=128)   # 4 row tiles at this toy shape
    out = jax.block_until_ready(out)

    assert out.shape == (N, Cout, 2 * H, 2 * W), out.shape

    ref = jax.block_until_ready(reference_forward(x, w, b, gamma, beta))
    # bf16 MXU operands (f32 accumulation) -> tolerance loosened vs all-f32.
    err = float(jnp.max(jnp.abs(out - ref)))
    assert jnp.allclose(out, ref, atol=3e-2, rtol=3e-2), err

    print("KERNEL_OK")
</pallas_src>

<mosaic_0001>
module attributes {stable_mosaic.version = 11 : i64} {
  func.func @_conv_stats_kernel(%arg0: i32, %arg1: memref<128x36xbf16, #tpu.memory_space<vmem>>, %arg2: memref<36x32xbf16, #tpu.memory_space<vmem>>, %arg3: memref<128x32xf32, #tpu.memory_space<vmem>>, %arg4: memref<1x2x32xf32, #tpu.memory_space<vmem>>) attributes {dimension_semantics = [#tpu.dimension_semantics<parallel>], iteration_bounds = array<i64: 4>, scalar_prefetch = 0 : i64, scratch_operands = 0 : i64, tpu.core_type = #tpu.core_type<tc>, window_params = [{transform_indices = @transform_0, window_bounds = array<i64: 128, 36>}, {pipeline_mode = #tpu.pipeline_mode<synchronous>, transform_indices = @transform_1, window_bounds = array<i64: 36, 32>}, {transform_indices = @transform_2, window_bounds = array<i64: 128, 32>}, {transform_indices = @transform_3, window_bounds = array<i64: 1, 2, 32>}]} {
    %c0 = arith.constant 0 : index
    %c0_0 = arith.constant 0 : index
    %0 = vector.load %arg1[%c0, %c0_0] : memref<128x36xbf16, #tpu.memory_space<vmem>>, vector<128x36xbf16>
    %c0_1 = arith.constant 0 : index
    %c0_2 = arith.constant 0 : index
    %1 = vector.load %arg2[%c0_1, %c0_2] : memref<36x32xbf16, #tpu.memory_space<vmem>>, vector<36x32xbf16>
    %cst = arith.constant dense<0.000000e+00> : vector<128x32xf32>
    %2 = tpu.matmul %0, %1, %cst {dimension_numbers = #tpu.dot_dimension_numbers<[1], [0], [0], [1], [0, 0, 1, 1], [], []>} : vector<128x36xbf16>, vector<36x32xbf16>, vector<128x32xf32> -> vector<128x32xf32>
    %c0_3 = arith.constant 0 : index
    %c0_4 = arith.constant 0 : index
    %3 = vector.load %arg3[%c0_3, %c0_4] : memref<128x32xf32, #tpu.memory_space<vmem>>, vector<128x32xf32>
    tpu.vector_store %arg3[%c0_3, %c0_4], %2 {strides = array<i32>} : memref<128x32xf32, #tpu.memory_space<vmem>>, vector<128x32xf32>,
    %cst_5 = arith.constant dense<0.000000e+00> : vector<32xf32>
    %4 = vector.multi_reduction <add>, %2, %cst_5 [0] : vector<128x32xf32> to vector<32xf32>
    %5 = vector.shape_cast %4 : vector<32xf32> to vector<1x32xf32>
    %6 = arith.mulf %2, %2 : vector<128x32xf32>
    %cst_6 = arith.constant dense<0.000000e+00> : vector<32xf32>
    %7 = vector.multi_reduction <add>, %6, %cst_6 [0] : vector<128x32xf32> to vector<32xf32>
    %8 = vector.shape_cast %7 : vector<32xf32> to vector<1x32xf32>
    %9 = tpu.concatenate %5, %8 in 0 : vector<1x32xf32>, vector<1x32xf32> -> vector<2x32xf32>
    %c0_7 = arith.constant 0 : index
    %c0_8 = arith.constant 0 : index
    %c0_9 = arith.constant 0 : index
    %10 = vector.load %arg4[%c0_7, %c0_8, %c0_9] : memref<1x2x32xf32, #tpu.memory_space<vmem>>, vector<1x2x32xf32>
    %11 = vector.shape_cast %10 : vector<1x2x32xf32> to vector<2x32xf32>
    %12 = vector.shape_cast %9 : vector<2x32xf32> to vector<1x2x32xf32>
    tpu.vector_store %arg4[%c0_7, %c0_8, %c0_9], %12 {strides = array<i32>} : memref<1x2x32xf32, #tpu.memory_space<vmem>>, vector<1x2x32xf32>,
    return
  }
  func.func @transform_0(%arg0: i32) -> (i32, i32) {
    %c0_i32 = arith.constant 0 : i32
    %c0_i32_0 = arith.constant 0 : i32
    return %arg0, %c0_i32 : i32, i32
  }
  func.func @transform_1(%arg0: i32) -> (i32, i32) {
    %c0_i32 = arith.constant 0 : i32
    %c0_i32_0 = arith.constant 0 : i32
    %c0_i32_1 = arith.constant 0 : i32
    return %c0_i32, %c0_i32_0 : i32, i32
  }
  func.func @transform_2(%arg0: i32) -> (i32, i32) {
    %c0_i32 = arith.constant 0 : i32
    %c0_i32_0 = arith.constant 0 : i32
    return %arg0, %c0_i32 : i32, i32
  }
  func.func @transform_3(%arg0: i32) -> (i32, i32, i32) {
    %c0_i32 = arith.constant 0 : i32
    %c0_i32_0 = arith.constant 0 : i32
    %c0_i32_1 = arith.constant 0 : i32
    return %arg0, %c0_i32, %c0_i32_0 : i32, i32, i32
  }
}

module attributes {stable_mosaic.version = 11 : i64} {
  func.func @_bn_relu_kernel(%arg0: i32, %arg1: memref<128x32xf32, #tpu.memory_space<vmem>>, %arg2: memref<1x32xf32, #tpu.memory_space<vmem>>, %arg3: memref<1x32xf32, #tpu.memory_space<vmem>>, %arg4: memref<128x32xf32, #tpu.memory_space<vmem>>) attributes {dimension_semantics = [#tpu.dimension_semantics<parallel>], iteration_bounds = array<i64: 4>, scalar_prefetch = 0 : i64, scratch_operands = 0 : i64, tpu.core_type = #tpu.core_type<tc>, window_params = [{transform_indices = @transform_0, window_bounds = array<i64: 128, 32>}, {pipeline_mode = #tpu.pipeline_mode<synchronous>, transform_indices = @transform_1, window_bounds = array<i64: 1, 32>}, {pipeline_mode = #tpu.pipeline_mode<synchronous>, transform_indices = @transform_2, window_bounds = array<i64: 1, 32>}, {transform_indices = @transform_3, window_bounds = array<i64: 128, 32>}]} {
    %c0 = arith.constant 0 : index
    %c0_0 = arith.constant 0 : index
    %0 = vector.load %arg1[%c0, %c0_0] : memref<128x32xf32, #tpu.memory_space<vmem>>, vector<128x32xf32>
    %c0_1 = arith.constant 0 : index
    %c0_2 = arith.constant 0 : index
    %1 = vector.load %arg2[%c0_1, %c0_2] : memref<1x32xf32, #tpu.memory_space<vmem>>, vector<1x32xf32>
    %2 = vector.broadcast %1 : vector<1x32xf32> to vector<128x32xf32>
    %3 = arith.mulf %0, %2 : vector<128x32xf32>
    %c0_3 = arith.constant 0 : index
    %c0_4 = arith.constant 0 : index
    %4 = vector.load %arg3[%c0_3, %c0_4] : memref<1x32xf32, #tpu.memory_space<vmem>>, vector<1x32xf32>
    %5 = vector.broadcast %4 : vector<1x32xf32> to vector<128x32xf32>
    %6 = arith.addf %3, %5 : vector<128x32xf32>
    %cst = arith.constant 0.000000e+00 : f32
    %7 = vector.broadcast %cst : f32 to vector<128x32xf32>
    %8 = arith.maximumf %6, %7 : vector<128x32xf32>
    %c0_5 = arith.constant 0 : index
    %c0_6 = arith.constant 0 : index
    %9 = vector.load %arg4[%c0_5, %c0_6] : memref<128x32xf32, #tpu.memory_space<vmem>>, vector<128x32xf32>
    tpu.vector_store %arg4[%c0_5, %c0_6], %8 {strides = array<i32>} : memref<128x32xf32, #tpu.memory_space<vmem>>, vector<128x32xf32>,
    return
  }
  func.func @transform_0(%arg0: i32) -> (i32, i32) {
    %c0_i32 = arith.constant 0 : i32
    %c0_i32_0 = arith.constant 0 : i32
    return %arg0, %c0_i32 : i32, i32
  }
  func.func @transform_1(%arg0: i32) -> (i32, i32) {
    %c0_i32 = arith.constant 0 : i32
    %c0_i32_0 = arith.constant 0 : i32
    %c0_i32_1 = arith.constant 0 : i32
    return %c0_i32, %c0_i32_0 : i32, i32
  }
  func.func @transform_2(%arg0: i32) -> (i32, i32) {
    %c0_i32 = arith.constant 0 : i32
    %c0_i32_0 = arith.constant 0 : i32
    %c0_i32_1 = arith.constant 0 : i32
    return %c0_i32, %c0_i32_0 : i32, i32
  }
  func.func @transform_3(%arg0: i32) -> (i32, i32) {
    %c0_i32 = arith.constant 0 : i32
    %c0_i32_0 = arith.constant 0 : i32
    return %arg0, %c0_i32 : i32, i32
  }
}

</mosaic_0001>

<llo_original>
// kernel: tile.18
$region0: #{tile.18}
  #allocation0 [shape = 's32[1]{0}', space=sflag, size = 0x4, scoped, tag = 'scoped memory for tile.18']
  %s0 = inlined_call_operand.vmem [shape: f32[8], index: 0, kind: input, shape index: {}]
  %s1 = inlined_call_operand.vmem [shape: f32[4,8], index: 1, kind: output, shape index: {}]
  // Predicated region
  $region2: #{tile.18} parent=0 // pred_check
    _
  $region3: #{tile.18} parent=0 // pred_check_branch
    %3 = sbr.rel (0) target = $region5
  $region4: #{tile.18} parent=0 // pred_region
    _
  $region5: #{tile.18} parent=0 // pred_fallthru
    _
  %v4 = vld [vmem:[%s0] ss:$0 sm:$0xff]
  %5 = vst [vmem:[%s1] sm:$0xf] %v4

// kernel: tile.19
$region0: #{tile.19}
  %s0 = inlined_call_operand.vmem [shape: f32[4,8], index: 0, kind: input, shape index: {}]
  %s1 = inlined_call_operand.vmem [shape: f32[1,32], index: 1, kind: output, shape index: {}]
  $region1: #{tile.19} parent=0
    #allocation0 [shape = 'u8[4096]{0}', space=vmem, size = 0x1000, scoped, tag = 'scoped mem for output reshape']
    #allocation1 [shape = 'u8[4096]{0}', space=vmem, size = 0x1000, scoped, tag = 'scoped mem for input reshape']
    %s3 = sshllo.u32 0, 4
    %v4 = vld [vmem:[%s0] sm:%s3]
    %5 = vst [vmem:[#allocation1] sm:%s3] %v4
    %v6 = vld [vmem:[#allocation1] sm:$0x1]
    %vm7 = vcmask 64512
    %8 = vst.msk [vmem:[#allocation0] sm:$0x1] %vm7, %v6
    %s9 = scalar_lea.vmem [#allocation1], 3
    %v10 = vld [vmem:[%s9] sm:$0x1]
    %11 = vrot.lane.b32.xlu0 %v10, 24
    %v12 = vpop.permute.xlu0 %11
    %vm13 = vcmask 261312
    %14 = vst.msk [vmem:[#allocation0] sm:$0x1] %vm13, %v12
    %s15 = scalar_lea.vmem [#allocation1], 2
    %v16 = vld [vmem:[%s15] sm:$0x1]
    %17 = vrot.lane.b32.xlu0 %v16, 16
    %v18 = vpop.permute.xlu0 %17
    %vm19 = vcmask 195712
    %20 = vst.msk [vmem:[#allocation0] sm:$0x1] %vm19, %v18
    %s21 = scalar_lea.vmem [#allocation1], 1
    %v22 = vld [vmem:[%s21] sm:$0x1]
    %23 = vrot.lane.b32.xlu0 %v22, 8
    %v24 = vpop.permute.xlu0 %23
    %vm25 = vcmask 130112
    %26 = vst.msk [vmem:[#allocation0] sm:$0x1] %vm25, %v24
    %s28 = sshllo.u32 0, 1
    %v30 = vld [vmem:[#allocation0] sm:%s28]
    %s31 = sshllo.u32 0, 1
    %32 = vst [vmem:[%s1] sm:%s31] %v30

// kernel: upsample_unit_forward.2
$region0: #{upsample_unit_forward.2}
  #allocation0 [shape = 'u32[]', space=smem, size = 0x4, offset = 0x4, fixed_abs, tag = 'smem constant byte address 0x4 - core index']
  #allocation1 [shape = 'u32[144,128]{1,0:T(1,128)}', space=vmem, size = 0x12000, scoped, tag = 'internal scratch']
  %s0 = inlined_call_operand.vmem [shape: bf16[512,36], index: 0, kind: input, shape index: {}]
  %s1 = inlined_call_operand.vmem [shape: bf16[36,32], index: 1, kind: input, shape index: {}]
  %s2 = inlined_call_operand.vmem [shape: f32[512,32], index: 2, kind: output, shape index: {0}]
  %s3 = inlined_call_operand.vmem [shape: f32[4,2,32], index: 3, kind: output, shape index: {1}]
  %4 = xla_tuple %s2, %s3
  %s5 = sld [smem:[#allocation0]]
  $region49: #{upsample_unit_forward.2} parent=0
    _
  %s7 = ssub.s32 1, %s5
  %s8 = scalar_select 0, %s7, %s5
  loop: start=0, step=1, limit=6
  $region2: #{upsample_unit_forward.2} parent=0 // loop_pre_header
    _
  $region3: #{upsample_unit_forward.2} parent=0 // loop_header
    %s10 = sphi 0, %s14
    %p11 = scmp.ge.s32.totalorder %s10, 6
    %s20 = sphi 0, %s22
    %s23 = sphi 0, %s20
    %s24 = sphi 0, %s23
    %s40 = sphi 0, %s24
    %s44 = sphi 0, %s44
    %s46 = sphi 0, %s44
    %s47 = sphi 0, %s46
    %s61 = sphi 0, %s47
    %s67 = sphi 0, %s69
    %s70 = sphi 0, %s67
    %s71 = sphi 0, %s70
    %s87 = sphi 0, %s71
    %s93 = sphi 0, %s95
    %s96 = sphi 0, %s93
    %s97 = sphi 0, %s96
    %s113 = sphi 0, %s97
  $region4: #{upsample_unit_forward.2} parent=0 // loop_header_branch
    %13 = sbr.rel (%p11) target = $region8
  $region5: #{upsample_unit_forward.2} parent=0 // loop_body
    %s15 = ssub.s32 %s10, 1
    %s16 = ssub.s32 %s10, 2
    %s17 = sadd.s32 %s10, 1
    %s18 = ssub.s32 %s10, %s17
    %p19 = scmp.eq.s32.totalorder %s18, 0
    %s21 = sadd.s32 %s20, 1
    %s22 = scalar_select %p19, %s20, %s21
    %p25 = pneg %p19
    %p26 = scmp.eq.s32.totalorder %s10, 3
    %p27 = por %p25, %p26
    %p28 = scmp.ne.s32.totalorder %s20, %s23
    %p29 = scmp.eq.s32.totalorder %s10, 0
    %p30 = por %p28, %p29
    %p31 = scmp.ne.s32.totalorder %s20, %s23
    %p32 = scmp.eq.s32.totalorder %s15, 3
    %p33 = por %p31, %p32
    %p34 = scmp.ne.s32.totalorder %s23, %s24
    %p35 = scmp.eq.s32.totalorder %s15, 0
    %p36 = por %p34, %p35
    %p37 = scmp.ne.s32.totalorder %s23, %s24
    %p38 = scmp.eq.s32.totalorder %s16, 3
    %p39 = por %p37, %p38
    %p41 = scmp.ne.s32.totalorder %s24, %s40
    %p42 = scmp.eq.s32.totalorder %s16, 0
    %p43 = por %p41, %p42
    %s45 = sadd.s32 %s44, 1
    %p48 = scmp.eq.s32.totalorder %s10, 3
    %p49 = scmp.ne.s32.totalorder %s44, %s46
    %p50 = scmp.eq.s32.totalorder %s10, 0
    %p51 = por %p49, %p50
    %p52 = scmp.ne.s32.totalorder %s44, %s46
    %p53 = scmp.eq.s32.totalorder %s15, 3
    %p54 = por %p52, %p53
    %p55 = scmp.ne.s32.totalorder %s46, %s47
    %p56 = scmp.eq.s32.totalorder %s15, 0
    %p57 = por %p55, %p56
    %p58 = scmp.ne.s32.totalorder %s46, %s47
    %p59 = scmp.eq.s32.totalorder %s16, 3
    %p60 = por %p58, %p59
    %p62 = scmp.ne.s32.totalorder %s47, %s61
    %p63 = scmp.eq.s32.totalorder %s16, 0
    %p64 = por %p62, %p63
    %s65 = ssub.s32 %s10, %s17
    %p66 = scmp.eq.s32.totalorder %s65, 0
    %s68 = sadd.s32 %s67, 1
    %s69 = scalar_select %p66, %s67, %s68
    %p72 = pneg %p66
    %p73 = scmp.eq.s32.totalorder %s10, 3
    %p74 = por %p72, %p73
    %p75 = scmp.ne.s32.totalorder %s67, %s70
    %p76 = scmp.eq.s32.totalorder %s10, 0
    %p77 = por %p75, %p76
    %p78 = scmp.ne.s32.totalorder %s67, %s70
    %p79 = scmp.eq.s32.totalorder %s15, 3
    %p80 = por %p78, %p79
    %p81 = scmp.ne.s32.totalorder %s70, %s71
    %p82 = scmp.eq.s32.totalorder %s15, 0
    %p83 = por %p81, %p82
    %p84 = scmp.ne.s32.totalorder %s70, %s71
    %p85 = scmp.eq.s32.totalorder %s16, 3
    %p86 = por %p84, %p85
    %p88 = scmp.ne.s32.totalorder %s71, %s87
    %p89 = scmp.eq.s32.totalorder %s16, 0
    %p90 = por %p88, %p89
    %s91 = ssub.s32 %s10, %s17
    %p92 = scmp.eq.s32.totalorder %s91, 0
    %s94 = sadd.s32 %s93, 1
    %s95 = scalar_select %p92, %s93, %s94
    %p98 = pneg %p92
    %p99 = scmp.eq.s32.totalorder %s10, 3
    %p100 = por %p98, %p99
    %p101 = scmp.ne.s32.totalorder %s93, %s96
    %p102 = scmp.eq.s32.totalorder %s10, 0
    %p103 = por %p101, %p102
    %p104 = scmp.ne.s32.totalorder %s93, %s96
    %p105 = scmp.eq.s32.totalorder %s15, 3
    %p106 = por %p104, %p105
    %p107 = scmp.ne.s32.totalorder %s96, %s97
    %p108 = scmp.eq.s32.totalorder %s15, 0
    %p109 = por %p107, %p108
    %p110 = scmp.ne.s32.totalorder %s96, %s97
    %p111 = scmp.eq.s32.totalorder %s16, 3
    %p112 = por %p110, %p111
    %p114 = scmp.ne.s32.totalorder %s97, %s113
    %p115 = scmp.eq.s32.totalorder %s16, 0
    %p116 = por %p114, %p115
    %p117 = scmp.le.s32.totalorder 1, %s10
    %p118 = scmp.lt.s32.totalorder %s10, 5
    %p119 = pnand %p117, %p118
    %p120 = pneg %p119
    // Predicated region
    $region9: #{upsample_unit_forward.2} parent=5 // pred_check
      _
    $region10: #{upsample_unit_forward.2} parent=5 // pred_check_branch
      %122 = sbr.rel (%p119) target = $region12
    $region11: #{upsample_unit_forward.2} parent=5 // pred_region
      %s123 = ssub.s32 %s10, 1
      // Predicated region
      $region13: #{upsample_unit_forward.2} parent=11 // pred_check
        %p124 = pneg %p57
      $region14: #{upsample_unit_forward.2} parent=11 // pred_check_branch
        %126 = sbr.rel (%p124) target = $region16
      $region15: #{upsample_unit_forward.2} parent=11 // pred_region
        _
      $region16: #{upsample_unit_forward.2} parent=11 // pred_fallthru
        _
    $region12: #{upsample_unit_forward.2} parent=5 // pred_fallthru
      _
    %p127 = scmp.lt.s32.totalorder %s10, 4
    // Predicated region
    $region17: #{upsample_unit_forward.2} parent=5 // pred_check
      %p128 = pneg %p127
    $region18: #{upsample_unit_forward.2} parent=5 // pred_check_branch
      %130 = sbr.rel (%p128) target = $region20
    $region19: #{upsample_unit_forward.2} parent=5 // pred_region
      // Predicated region
      $region21: #{upsample_unit_forward.2} parent=19 // pred_check
        %p131 = pneg %p30
      $region22: #{upsample_unit_forward.2} parent=19 // pred_check_branch
        %133 = sbr.rel (%p131) target = $region24
      $region23: #{upsample_unit_forward.2} parent=19 // pred_region
        %s134 = smul.u32 16, %s10
        %p135 = scmp.lt.s32.totalorder %s134, 63
        %s136 = scalar_select %p135, %s134, 63
        %s137 = smul.addr %s136, 4
        %s138 = scalar_lea.vmem %s0, %s137
        %s139 = smul.u32 16, %s10
      $region24: #{upsample_unit_forward.2} parent=19 // pred_fallthru
        _
    $region20: #{upsample_unit_forward.2} parent=5 // pred_fallthru
      _
    %p140 = scmp.le.s32.totalorder 1, %s10
    %p141 = scmp.lt.s32.totalorder %s10, 5
    %p142 = pnand %p140, %p141
    %p143 = pneg %p142
    // Predicated region
    $region25: #{upsample_unit_forward.2} parent=5 // pred_check
      _
    $region26: #{upsample_unit_forward.2} parent=5 // pred_check_branch
      %145 = sbr.rel (%p142) target = $region28
    $region27: #{upsample_unit_forward.2} parent=5 // pred_region
      %s146 = ssub.s32 %s10, 1
      %s147 = smul.u32 16, %s15
      %p148 = scmp.lt.s32.totalorder %s147, 63
      %s149 = scalar_select %p148, %s147, 63
      %s150 = smul.addr %s149, 4
      %s151 = scalar_lea.vmem %s0, %s150
      %p152 = pneg %p36
      %p153 = pneg %p33
      %p154 = pneg %p57
      %p155 = pneg %p54
      %p156 = pneg %p83
      %p157 = pneg %p80
      %s158 = smul.u32 16, %s15
      %p159 = scmp.lt.s32.totalorder %s158, 63
      %s160 = scalar_select %p159, %s158, 63
      %s161 = smul.addr %s160, 8
      %s162 = scalar_lea.vmem %s2, %s161
      %p163 = pneg %p109
      %p164 = pneg %p106
      %p165 = scmp.lt.s32.totalorder %s15, 3
      %s166 = scalar_select %p165, %s15, 3
      %s167 = smul.addr %s166, 2
      %s168 = scalar_lea.vmem %s3, %s167
      %s169 = smul.u32 16, %s15
      %p170 = scmp.lt.s32.totalorder %s169, 63
      %s171 = scalar_select %p170, %s169, 63
      %s172 = smul.addr %s171, 4
      %s173 = scalar_lea.vmem %s0, %s172
      %s174 = smul.u32 16, %s15
      %s175 = smul.u32 16, %s15
      %p176 = scmp.lt.s32.totalorder %s175, 63
      %s177 = scalar_select %p176, %s175, 63
      %s178 = smul.addr %s177, 8
      %s179 = scalar_lea.vmem %s2, %s178
      %s180 = smul.u32 16, %s15
      %p181 = scmp.lt.s32.totalorder %s15, 3
      %s182 = scalar_select %p181, %s15, 3
      %s183 = smul.addr %s182, 2
      %s184 = scalar_lea.vmem %s3, %s183
      %v186 = vld [vmem:[%s173] sm:$0xf]
      %v187 = vld [vmem:[%s173 + $0x4] sm:$0xf]
      %v188 = vld [vmem:[%s173 + $0x8] sm:$0xf]
      %v189 = vld [vmem:[%s173 + $0xc] sm:$0xf]
      %v190 = vld [vmem:[%s173 + $0x10] sm:$0xf]
      %v191 = vld [vmem:[%s173 + $0x14] sm:$0xf]
      %v192 = vld [vmem:[%s173 + $0x18] sm:$0xf]
      %v193 = vld [vmem:[%s173 + $0x1c] sm:$0xf]
      %v194 = vld [vmem:[%s173 + $0x20] sm:$0xf]
      %v195 = vld [vmem:[%s173 + $0x24] sm:$0xf]
      %v196 = vld [vmem:[%s173 + $0x28] sm:$0xf]
      %v197 = vld [vmem:[%s173 + $0x2c] sm:$0xf]
      %v198 = vld [vmem:[%s173 + $0x30] sm:$0xf]
      %v199 = vld [vmem:[%s173 + $0x34] sm:$0xf]
      %v200 = vld [vmem:[%s173 + $0x38] sm:$0xf]
      %v201 = vld [vmem:[%s173 + $0x3c] sm:$0xf]
      %v202 = vld [vmem:[%s1] sm:$0xf]
      %v203 = vld [vmem:[%s1 + $0x4] sm:$0xf]
      %v204 = vld [vmem:[%s1 + $0x8] sm:$0xf]
      %v205 = vld [vmem:[%s1 + $0xc] sm:$0xf]
      %v206 = vld [vmem:[%s1 + $0x10] sm:$0x3]
      %v223 = vunpack.c.l.b16 %v186
      %v224 = vunpack.c.l.b16 %v187
      %v225 = vunpack.c.l.b16 %v188
      %v226 = vunpack.c.l.b16 %v189
      %v227 = vunpack.c.l.b16 %v190
      %v228 = vunpack.c.l.b16 %v191
      %v229 = vunpack.c.l.b16 %v192
      %v230 = vunpack.c.l.b16 %v193
      %v231 = vunpack.c.l.b16 %v194
      %v232 = vunpack.c.l.b16 %v195
      %v233 = vunpack.c.l.b16 %v196
      %v234 = vunpack.c.l.b16 %v197
      %v235 = vunpack.c.l.b16 %v198
      %v236 = vunpack.c.l.b16 %v199
      %v237 = vunpack.c.l.b16 %v200
      %v238 = vunpack.c.l.b16 %v201
      %v239 = vpack.c.b16 %v224, %v223
      %v240 = vpack.c.b16 %v226, %v225
      %v241 = vpack.c.b16 %v228, %v227
      %v242 = vpack.c.b16 %v230, %v229
      %v243 = vpack.c.b16 %v232, %v231
      %v244 = vpack.c.b16 %v234, %v233
      %v245 = vpack.c.b16 %v236, %v235
      %v246 = vpack.c.b16 %v238, %v237
      %v252 = vunpack.c.l.b16 %v202
      %v253 = vunpack.c.l.b16 %v203
      %v254 = vunpack.c.l.b16 %v204
      %v255 = vunpack.c.l.b16 %v205
      %v256 = vunpack.c.l.b16 %v206
      %v257 = vpack.c.b16 %v253, %v252
      %v258 = vpack.c.b16 %v255, %v254
      %v259 = vpack.c.b16 %v256, %v256
      %vm262 = vcmask 293888
      %v264 = vsel %vm262, %v239, 0
      %v267 = vsel %vm262, %v240, 0
      %v270 = vsel %vm262, %v241, 0
      %v273 = vsel %vm262, %v242, 0
      %v276 = vsel %vm262, %v243, 0
      %v279 = vsel %vm262, %v244, 0
      %v282 = vsel %vm262, %v245, 0
      %v285 = vsel %vm262, %v246, 0
      %vm287 = vcmask 1041408
      %v289 = vsel %vm287, %v259, 0
      %291 = vmatprep.subr.bf16.mxu0 0
      %292 = vmatpush1.bf16.msra.mxu0 %v257
      %293 = vmatprep.subr.bf16.mxu0 0
      %294 = vmatpush1.bf16.msra.mxu0 %v258
      %295 = vmatprep.subr.bf16.mxu0 0
      %296 = vmatpush1.bf16.msra.mxu0 %v289
      %297 = vmatprep.subr.bf16.mxu0 0
      %298 = vmatpush1.bf16.msra.mxu0 0
      %299 = vmatprep.subr.bf16.mxu0 0
      %300 = vmatpush1.bf16.msra.mxu0 0
      %301 = vmatprep.subr.bf16.mxu0 0
      %302 = vmatpush1.bf16.msra.mxu0 0
      %303 = vmatprep.subr.bf16.mxu0 0
      %304 = vmatpush1.bf16.msra.mxu0 0
      %305 = vmatprep.subr.bf16.mxu0 0
      %306 = vmatpush1.bf16.msra.mxu0 0
      %307 = vmatprep.subr.bf16.mxu0 0
      %308 = vmatpush1.bf16.msra.mxu0 0
      %309 = vmatprep.subr.bf16.mxu0 0
      %310 = vmatpush1.bf16.msra.mxu0 0
      %311 = vmatprep.subr.bf16.mxu0 0
      %312 = vmatpush1.bf16.msra.mxu0 0
      %313 = vmatprep.subr.bf16.mxu0 0
      %314 = vmatpush1.bf16.msra.mxu0 0
      %315 = vmatprep.subr.bf16.mxu0 0
      %316 = vmatpush1.bf16.msra.mxu0 0
      %317 = vmatprep.subr.bf16.mxu0 0
      %318 = vmatpush1.bf16.msra.mxu0 0
      %319 = vmatprep.subr.bf16.mxu0 0
      %320 = vmatpush1.bf16.msra.mxu0 0
      %321 = vmatprep.subr.bf16.mxu0 0
      %322 = vmatpush1.bf16.msra.mxu0 0
      %323 = vmatprep.mubr.bf16.mxu0 0
      %324 = vmatmul.mubr.bf16.gmra.mrb[0].mxu0 %v264
      %v325 = vpop.f32.mrb[0].mxu0
      %v326 = vadd.f32 0.0, %v325
      %v327 = vpop.f32.mrb[0].mxu0
      %v328 = vpop.f32.mrb[0].mxu0
      %v329 = vadd.f32 0.0, %v328
      %v330 = vpop.f32.mrb[0].mxu0
      %331 = vmatprep.mubr.bf16.mxu0 0
      %332 = vmatmul.mubr.bf16.gmra.mrb[0].mxu0 %v267
      %v333 = vpop.f32.mrb[0].mxu0
      %v334 = vadd.f32 0.0, %v333
      %v335 = vpop.f32.mrb[0].mxu0
      %v336 = vpop.f32.mrb[0].mxu0
      %v337 = vadd.f32 0.0, %v336
      %v338 = vpop.f32.mrb[0].mxu0
      %339 = vmatprep.mubr.bf16.mxu0 0
      %340 = vmatmul.mubr.bf16.gmra.mrb[0].mxu0 %v270
      %v341 = vpop.f32.mrb[0].mxu0
      %v342 = vadd.f32 0.0, %v341
      %v343 = vpop.f32.mrb[0].mxu0
      %v344 = vpop.f32.mrb[0].mxu0
      %v345 = vadd.f32 0.0, %v344
      %v346 = vpop.f32.mrb[0].mxu0
      %347 = vmatprep.mubr.bf16.mxu0 0
      %348 = vmatmul.mubr.bf16.gmra.mrb[0].mxu0 %v273
      %v349 = vpop.f32.mrb[0].mxu0
      %v350 = vadd.f32 0.0, %v349
      %v351 = vpop.f32.mrb[0].mxu0
      %v352 = vpop.f32.mrb[0].mxu0
      %v353 = vadd.f32 0.0, %v352
      %v354 = vpop.f32.mrb[0].mxu0
      %355 = vmatprep.mubr.bf16.mxu0 0
      %356 = vmatmul.mubr.bf16.gmra.mrb[0].mxu0 %v276
      %v357 = vpop.f32.mrb[0].mxu0
      %v358 = vadd.f32 0.0, %v357
      %v359 = vpop.f32.mrb[0].mxu0
      %v360 = vpop.f32.mrb[0].mxu0
      %v361 = vadd.f32 0.0, %v360
      %v362 = vpop.f32.mrb[0].mxu0
      %363 = vmatprep.mubr.bf16.mxu0 0
      %364 = vmatmul.mubr.bf16.gmra.mrb[0].mxu0 %v279
      %v365 = vpop.f32.mrb[0].mxu0
      %v366 = vadd.f32 0.0, %v365
      %v367 = vpop.f32.mrb[0].mxu0
      %v368 = vpop.f32.mrb[0].mxu0
      %v369 = vadd.f32 0.0, %v368
      %v370 = vpop.f32.mrb[0].mxu0
      %371 = vmatprep.mubr.bf16.mxu0 0
      %372 = vmatmul.mubr.bf16.gmra.mrb[0].mxu0 %v282
      %v373 = vpop.f32.mrb[0].mxu0
      %v374 = vadd.f32 0.0, %v373
      %v375 = vpop.f32.mrb[0].mxu0
      %v376 = vpop.f32.mrb[0].mxu0
      %v377 = vadd.f32 0.0, %v376
      %v378 = vpop.f32.mrb[0].mxu0
      %379 = vmatprep.mubr.bf16.mxu0 0
      %380 = vmatmul.mubr.bf16.gmra.mrb[0].mxu0 %v285
      %v381 = vpop.f32.mrb[0].mxu0
      %v382 = vadd.f32 0.0, %v381
      %v383 = vpop.f32.mrb[0].mxu0
      %v384 = vpop.f32.mrb[0].mxu0
      %v385 = vadd.f32 0.0, %v384
      %v386 = vpop.f32.mrb[0].mxu0
      %387 = vdwg.mxu0
      %vm388 = vcmask 261120
      %389 = vst.msk [vmem:[%s179] sm:$0xff] %vm388, %v326
      %390 = vst.msk [vmem:[%s179 + $0x8] sm:$0xff] %vm388, %v329
      %391 = vst.msk [vmem:[%s179 + $0x10] sm:$0xff] %vm388, %v334
      %392 = vst.msk [vmem:[%s179 + $0x18] sm:$0xff] %vm388, %v337
      %393 = vst.msk [vmem:[%s179 + $0x20] sm:$0xff] %vm388, %v342
      %394 = vst.msk [vmem:[%s179 + $0x28] sm:$0xff] %vm388, %v345
      %395 = vst.msk [vmem:[%s179 + $0x30] sm:$0xff] %vm388, %v350
      %396 = vst.msk [vmem:[%s179 + $0x38] sm:$0xff] %vm388, %v353
      %397 = vst.msk [vmem:[%s179 + $0x40] sm:$0xff] %vm388, %v358
      %398 = vst.msk [vmem:[%s179 + $0x48] sm:$0xff] %vm388, %v361
      %399 = vst.msk [vmem:[%s179 + $0x50] sm:$0xff] %vm388, %v366
      %400 = vst.msk [vmem:[%s179 + $0x58] sm:$0xff] %vm388, %v369
      %401 = vst.msk [vmem:[%s179 + $0x60] sm:$0xff] %vm388, %v374
      %402 = vst.msk [vmem:[%s179 + $0x68] sm:$0xff] %vm388, %v377
      %403 = vst.msk [vmem:[%s179 + $0x70] sm:$0xff] %vm388, %v382
      %404 = vst.msk [vmem:[%s179 + $0x78] sm:$0xff] %vm388, %v385
      %v405 = vsel %vm388, %v326, 0.0
      %v406 = vsel %vm388, %v329, 0.0
      %v407 = vadd.f32 %v405, %v406
      %v408 = vsel %vm388, %v334, 0.0
      %v409 = vadd.f32 %v407, %v408
      %v410 = vsel %vm388, %v337, 0.0
      %v411 = vadd.f32 %v409, %v410
      %v412 = vsel %vm388, %v342, 0.0
      %v413 = vadd.f32 %v411, %v412
      %v414 = vsel %vm388, %v345, 0.0
      %v415 = vadd.f32 %v413, %v414
      %v416 = vsel %vm388, %v350, 0.0
      %v417 = vadd.f32 %v415, %v416
      %v418 = vsel %vm388, %v353, 0.0
      %v419 = vadd.f32 %v417, %v418
      %v420 = vsel %vm388, %v358, 0.0
      %v421 = vadd.f32 %v419, %v420
      %v422 = vsel %vm388, %v361, 0.0
      %v423 = vadd.f32 %v421, %v422
      %v424 = vsel %vm388, %v366, 0.0
      %v425 = vadd.f32 %v423, %v424
      %v426 = vsel %vm388, %v369, 0.0
      %v427 = vadd.f32 %v425, %v426
      %v428 = vsel %vm388, %v374, 0.0
      %v429 = vadd.f32 %v427, %v428
      %v430 = vsel %vm388, %v377, 0.0
      %v431 = vadd.f32 %v429, %v430
      %v432 = vsel %vm388, %v382, 0.0
      %v433 = vadd.f32 %v431, %v432
      %v434 = vsel %vm388, %v385, 0.0
      %v435 = vadd.f32 %v433, %v434
      %v436 = vrot.slane %v435, 4
      %v437 = vadd.f32 %v435, %v436
      %v438 = vrot.slane %v437, 2
      %v439 = vadd.f32 %v437, %v438
      %v440 = vrot.slane %v439, 1
      %v441 = vadd.f32 %v439, %v440
      %v442 = vmul.f32 %v326, %v326
      %v443 = vmul.f32 %v329, %v329
      %v444 = vmul.f32 %v334, %v334
      %v445 = vmul.f32 %v337, %v337
      %v446 = vmul.f32 %v342, %v342
      %v447 = vmul.f32 %v345, %v345
      %v448 = vmul.f32 %v350, %v350
      %v449 = vmul.f32 %v353, %v353
      %v450 = vmul.f32 %v358, %v358
      %v451 = vmul.f32 %v361, %v361
      %v452 = vmul.f32 %v366, %v366
      %v453 = vmul.f32 %v369, %v369
      %v454 = vmul.f32 %v374, %v374
      %v455 = vmul.f32 %v377, %v377
      %v456 = vmul.f32 %v382, %v382
      %v457 = vmul.f32 %v385, %v385
      %v458 = vsel %vm388, %v442, 0.0
      %v459 = vsel %vm388, %v443, 0.0
      %v460 = vadd.f32 %v458, %v459
      %v461 = vsel %vm388, %v444, 0.0
      %v462 = vadd.f32 %v460, %v461
      %v463 = vsel %vm388, %v445, 0.0
      %v464 = vadd.f32 %v462, %v463
      %v465 = vsel %vm388, %v446, 0.0
      %v466 = vadd.f32 %v464, %v465
      %v467 = vsel %vm388, %v447, 0.0
      %v468 = vadd.f32 %v466, %v467
      %v469 = vsel %vm388, %v448, 0.0
      %v470 = vadd.f32 %v468, %v469
      %v471 = vsel %vm388, %v449, 0.0
      %v472 = vadd.f32 %v470, %v471
      %v473 = vsel %vm388, %v450, 0.0
      %v474 = vadd.f32 %v472, %v473
      %v475 = vsel %vm388, %v451, 0.0
      %v476 = vadd.f32 %v474, %v475
      %v477 = vsel %vm388, %v452, 0.0
      %v478 = vadd.f32 %v476, %v477
      %v479 = vsel %vm388, %v453, 0.0
      %v480 = vadd.f32 %v478, %v479
      %v481 = vsel %vm388, %v454, 0.0
      %v482 = vadd.f32 %v480, %v481
      %v483 = vsel %vm388, %v455, 0.0
      %v484 = vadd.f32 %v482, %v483
      %v485 = vsel %vm388, %v456, 0.0
      %v486 = vadd.f32 %v484, %v485
      %v487 = vsel %vm388, %v457, 0.0
      %v488 = vadd.f32 %v486, %v487
      %v489 = vrot.slane %v488, 4
      %v490 = vadd.f32 %v488, %v489
      %v491 = vrot.slane %v490, 2
      %v492 = vadd.f32 %v490, %v491
      %v493 = vrot.slane %v492, 1
      %v494 = vadd.f32 %v492, %v493
      %vm495 = vcmask 1040384
      %v496 = vsel %vm495, %v441, %v494
      %vm497 = vcmask 254976
      %498 = vst.msk [vmem:[%s184] sm:$0x3] %vm497, %v496
      %s499 = smul.u32 16, %s15
      %p500 = scmp.lt.s32.totalorder %s499, 63
      %s501 = scalar_select %p500, %s499, 63
      %s502 = smul.addr %s501, 8
      %s503 = scalar_lea.vmem %s2, %s502
      %p504 = scmp.lt.s32.totalorder %s15, 3
      %s505 = scalar_select %p504, %s15, 3
      %s506 = smul.addr %s505, 2
      %s507 = scalar_lea.vmem %s3, %s506
      // Predicated region
      $region29: #{upsample_unit_forward.2} parent=27 // pred_check
        %p508 = pneg %p80
      $region30: #{upsample_unit_forward.2} parent=27 // pred_check_branch
        %510 = sbr.rel (%p508) target = $region32
      $region31: #{upsample_unit_forward.2} parent=27 // pred_region
        %s511 = smul.u32 16, %s15
      $region32: #{upsample_unit_forward.2} parent=27 // pred_fallthru
        _
      // Predicated region
      $region33: #{upsample_unit_forward.2} parent=27 // pred_check
        %p512 = pneg %p106
      $region34: #{upsample_unit_forward.2} parent=27 // pred_check_branch
        %514 = sbr.rel (%p512) target = $region36
      $region35: #{upsample_unit_forward.2} parent=27 // pred_region
        _
      $region36: #{upsample_unit_forward.2} parent=27 // pred_fallthru
        _
    $region28: #{upsample_unit_forward.2} parent=5 // pred_fallthru
      _
    %p515 = scmp.le.s32.totalorder 2, %s10
    // Predicated region
    $region37: #{upsample_unit_forward.2} parent=5 // pred_check
      %p516 = pneg %p515
    $region38: #{upsample_unit_forward.2} parent=5 // pred_check_branch
      %518 = sbr.rel (%p516) target = $region40
    $region39: #{upsample_unit_forward.2} parent=5 // pred_region
      %s519 = ssub.s32 %s10, 2
      // Predicated region
      $region41: #{upsample_unit_forward.2} parent=39 // pred_check
        %p520 = pneg %p86
      $region42: #{upsample_unit_forward.2} parent=39 // pred_check_branch
        %522 = sbr.rel (%p520) target = $region44
      $region43: #{upsample_unit_forward.2} parent=39 // pred_region
        %s523 = smul.u32 16, %s16
        %p524 = scmp.lt.s32.totalorder %s523, 63
        %s525 = scalar_select %p524, %s523, 63
        %s526 = smul.addr %s525, 8
        %s527 = scalar_lea.vmem %s2, %s526
      $region44: #{upsample_unit_forward.2} parent=39 // pred_fallthru
        _
      // Predicated region
      $region45: #{upsample_unit_forward.2} parent=39 // pred_check
        %p528 = pneg %p112
      $region46: #{upsample_unit_forward.2} parent=39 // pred_check_branch
        %530 = sbr.rel (%p528) target = $region48
      $region47: #{upsample_unit_forward.2} parent=39 // pred_region
        %p531 = scmp.lt.s32.totalorder %s16, 3
        %s532 = scalar_select %p531, %s16, 3
        %s533 = smul.addr %s532, 2
        %s534 = scalar_lea.vmem %s3, %s533
      $region48: #{upsample_unit_forward.2} parent=39 // pred_fallthru
        _
    $region40: #{upsample_unit_forward.2} parent=5 // pred_fallthru
      _
  $region6: #{upsample_unit_forward.2} parent=0 // loop_footer
    %s14 = sadd.s32 1, %s10
  $region7: #{upsample_unit_forward.2} parent=0 // loop_footer_branch
    %9 = sbr.rel target = $region3
  $region8: #{upsample_unit_forward.2} parent=0 // loop_exit
    _

// kernel: upsample_unit_forward.3
$region0: #{upsample_unit_forward.3}
  #allocation0 [shape = 'u32[]', space=smem, size = 0x4, offset = 0x4, fixed_abs, tag = 'smem constant byte address 0x4 - core index']
  #allocation1 [shape = 'u32[144,128]{1,0:T(1,128)}', space=vmem, size = 0x12000, scoped, tag = 'internal scratch']
  %s0 = inlined_call_operand.vmem [shape: f32[512,32], index: 0, kind: input, shape index: {}, may-alias: {0,3}]
  %s1 = inlined_call_operand.vmem [shape: f32[1,32], index: 1, kind: input, shape index: {}]
  %s2 = inlined_call_operand.vmem [shape: f32[1,32], index: 2, kind: input, shape index: {}]
  %s3 = inlined_call_operand.vmem [shape: f32[512,32], index: 3, kind: output, shape index: {}, may-alias: {0,3}]
  %s4 = sld [smem:[#allocation0]]
  $region45: #{upsample_unit_forward.3} parent=0
    _
  %s6 = ssub.s32 1, %s4
  %s7 = scalar_select 0, %s6, %s4
  loop: start=0, step=1, limit=6
  $region2: #{upsample_unit_forward.3} parent=0 // loop_pre_header
    _
  $region3: #{upsample_unit_forward.3} parent=0 // loop_header
    %s9 = sphi 0, %s13
    %p10 = scmp.ge.s32.totalorder %s9, 6
    %s19 = sphi 0, %s21
    %s22 = sphi 0, %s19
    %s23 = sphi 0, %s22
    %s39 = sphi 0, %s23
    %s43 = sphi 0, %s43
    %s45 = sphi 0, %s43
    %s46 = sphi 0, %s45
    %s60 = sphi 0, %s46
    %s64 = sphi 0, %s64
    %s66 = sphi 0, %s64
    %s67 = sphi 0, %s66
    %s81 = sphi 0, %s67
    %s87 = sphi 0, %s89
    %s90 = sphi 0, %s87
    %s91 = sphi 0, %s90
    %s107 = sphi 0, %s91
  $region4: #{upsample_unit_forward.3} parent=0 // loop_header_branch
    %12 = sbr.rel (%p10) target = $region8
  $region5: #{upsample_unit_forward.3} parent=0 // loop_body
    %s14 = ssub.s32 %s9, 1
    %s15 = ssub.s32 %s9, 2
    %s16 = sadd.s32 %s9, 1
    %s17 = ssub.s32 %s9, %s16
    %p18 = scmp.eq.s32.totalorder %s17, 0
    %s20 = sadd.s32 %s19, 1
    %s21 = scalar_select %p18, %s19, %s20
    %p24 = pneg %p18
    %p25 = scmp.eq.s32.totalorder %s9, 3
    %p26 = por %p24, %p25
    %p27 = scmp.ne.s32.totalorder %s19, %s22
    %p28 = scmp.eq.s32.totalorder %s9, 0
    %p29 = por %p27, %p28
    %p30 = scmp.ne.s32.totalorder %s19, %s22
    %p31 = scmp.eq.s32.totalorder %s14, 3
    %p32 = por %p30, %p31
    %p33 = scmp.ne.s32.totalorder %s22, %s23
    %p34 = scmp.eq.s32.totalorder %s14, 0
    %p35 = por %p33, %p34
    %p36 = scmp.ne.s32.totalorder %s22, %s23
    %p37 = scmp.eq.s32.totalorder %s15, 3
    %p38 = por %p36, %p37
    %p40 = scmp.ne.s32.totalorder %s23, %s39
    %p41 = scmp.eq.s32.totalorder %s15, 0
    %p42 = por %p40, %p41
    %s44 = sadd.s32 %s43, 1
    %p47 = scmp.eq.s32.totalorder %s9, 3
    %p48 = scmp.ne.s32.totalorder %s43, %s45
    %p49 = scmp.eq.s32.totalorder %s9, 0
    %p50 = por %p48, %p49
    %p51 = scmp.ne.s32.totalorder %s43, %s45
    %p52 = scmp.eq.s32.totalorder %s14, 3
    %p53 = por %p51, %p52
    %p54 = scmp.ne.s32.totalorder %s45, %s46
    %p55 = scmp.eq.s32.totalorder %s14, 0
    %p56 = por %p54, %p55
    %p57 = scmp.ne.s32.totalorder %s45, %s46
    %p58 = scmp.eq.s32.totalorder %s15, 3
    %p59 = por %p57, %p58
    %p61 = scmp.ne.s32.totalorder %s46, %s60
    %p62 = scmp.eq.s32.totalorder %s15, 0
    %p63 = por %p61, %p62
    %s65 = sadd.s32 %s64, 1
    %p68 = scmp.eq.s32.totalorder %s9, 3
    %p69 = scmp.ne.s32.totalorder %s64, %s66
    %p70 = scmp.eq.s32.totalorder %s9, 0
    %p71 = por %p69, %p70
    %p72 = scmp.ne.s32.totalorder %s64, %s66
    %p73 = scmp.eq.s32.totalorder %s14, 3
    %p74 = por %p72, %p73
    %p75 = scmp.ne.s32.totalorder %s66, %s67
    %p76 = scmp.eq.s32.totalorder %s14, 0
    %p77 = por %p75, %p76
    %p78 = scmp.ne.s32.totalorder %s66, %s67
    %p79 = scmp.eq.s32.totalorder %s15, 3
    %p80 = por %p78, %p79
    %p82 = scmp.ne.s32.totalorder %s67, %s81
    %p83 = scmp.eq.s32.totalorder %s15, 0
    %p84 = por %p82, %p83
    %s85 = ssub.s32 %s9, %s16
    %p86 = scmp.eq.s32.totalorder %s85, 0
    %s88 = sadd.s32 %s87, 1
    %s89 = scalar_select %p86, %s87, %s88
    %p92 = pneg %p86
    %p93 = scmp.eq.s32.totalorder %s9, 3
    %p94 = por %p92, %p93
    %p95 = scmp.ne.s32.totalorder %s87, %s90
    %p96 = scmp.eq.s32.totalorder %s9, 0
    %p97 = por %p95, %p96
    %p98 = scmp.ne.s32.totalorder %s87, %s90
    %p99 = scmp.eq.s32.totalorder %s14, 3
    %p100 = por %p98, %p99
    %p101 = scmp.ne.s32.totalorder %s90, %s91
    %p102 = scmp.eq.s32.totalorder %s14, 0
    %p103 = por %p101, %p102
    %p104 = scmp.ne.s32.totalorder %s90, %s91
    %p105 = scmp.eq.s32.totalorder %s15, 3
    %p106 = por %p104, %p105
    %p108 = scmp.ne.s32.totalorder %s91, %s107
    %p109 = scmp.eq.s32.totalorder %s15, 0
    %p110 = por %p108, %p109
    %p111 = scmp.le.s32.totalorder 1, %s9
    %p112 = scmp.lt.s32.totalorder %s9, 5
    %p113 = pnand %p111, %p112
    %p114 = pneg %p113
    // Predicated region
    $region9: #{upsample_unit_forward.3} parent=5 // pred_check
      _
    $region10: #{upsample_unit_forward.3} parent=5 // pred_check_branch
      %116 = sbr.rel (%p113) target = $region12
    $region11: #{upsample_unit_forward.3} parent=5 // pred_region
      %s117 = ssub.s32 %s9, 1
      // Predicated region
      $region13: #{upsample_unit_forward.3} parent=11 // pred_check
        %p118 = pneg %p56
      $region14: #{upsample_unit_forward.3} parent=11 // pred_check_branch
        %120 = sbr.rel (%p118) target = $region16
      $region15: #{upsample_unit_forward.3} parent=11 // pred_region
        _
      $region16: #{upsample_unit_forward.3} parent=11 // pred_fallthru
        _
      // Predicated region
      $region17: #{upsample_unit_forward.3} parent=11 // pred_check
        %p121 = pneg %p77
      $region18: #{upsample_unit_forward.3} parent=11 // pred_check_branch
        %123 = sbr.rel (%p121) target = $region20
      $region19: #{upsample_unit_forward.3} parent=11 // pred_region
        _
      $region20: #{upsample_unit_forward.3} parent=11 // pred_fallthru
        _
    $region12: #{upsample_unit_forward.3} parent=5 // pred_fallthru
      _
    %p124 = scmp.lt.s32.totalorder %s9, 4
    // Predicated region
    $region21: #{upsample_unit_forward.3} parent=5 // pred_check
      %p125 = pneg %p124
    $region22: #{upsample_unit_forward.3} parent=5 // pred_check_branch
      %127 = sbr.rel (%p125) target = $region24
    $region23: #{upsample_unit_forward.3} parent=5 // pred_region
      // Predicated region
      $region25: #{upsample_unit_forward.3} parent=23 // pred_check
        %p128 = pneg %p29
      $region26: #{upsample_unit_forward.3} parent=23 // pred_check_branch
        %130 = sbr.rel (%p128) target = $region28
      $region27: #{upsample_unit_forward.3} parent=23 // pred_region
        %s131 = smul.u32 16, %s9
        %p132 = scmp.lt.s32.totalorder %s131, 63
        %s133 = scalar_select %p132, %s131, 63
        %s134 = smul.addr %s133, 8
        %s135 = scalar_lea.vmem %s0, %s134
        %s136 = smul.u32 16, %s9
      $region28: #{upsample_unit_forward.3} parent=23 // pred_fallthru
        _
    $region24: #{upsample_unit_forward.3} parent=5 // pred_fallthru
      _
    %p137 = scmp.le.s32.totalorder 1, %s9
    %p138 = scmp.lt.s32.totalorder %s9, 5
    %p139 = pnand %p137, %p138
    %p140 = pneg %p139
    // Predicated region
    $region29: #{upsample_unit_forward.3} parent=5 // pred_check
      _
    $region30: #{upsample_unit_forward.3} parent=5 // pred_check_branch
      %142 = sbr.rel (%p139) target = $region32
    $region31: #{upsample_unit_forward.3} parent=5 // pred_region
      %s143 = ssub.s32 %s9, 1
      %s144 = smul.u32 16, %s14
      %p145 = scmp.lt.s32.totalorder %s144, 63
      %s146 = scalar_select %p145, %s144, 63
      %s147 = smul.addr %s146, 8
      %s148 = scalar_lea.vmem %s0, %s147
      %p149 = pneg %p35
      %p150 = pneg %p32
      %p151 = pneg %p56
      %p152 = pneg %p53
      %p153 = pneg %p77
      %p154 = pneg %p74
      %p155 = pneg %p103
      %p156 = pneg %p100
      %s157 = smul.u32 16, %s14
      %p158 = scmp.lt.s32.totalorder %s157, 63
      %s159 = scalar_select %p158, %s157, 63
      %s160 = smul.addr %s159, 8
      %s161 = scalar_lea.vmem %s3, %s160
      %s162 = smul.u32 16, %s14
      %p163 = scmp.lt.s32.totalorder %s162, 63
      %s164 = scalar_select %p163, %s162, 63
      %s165 = smul.addr %s164, 8
      %s166 = scalar_lea.vmem %s0, %s165
      %s167 = smul.u32 16, %s14
      %s168 = smul.u32 16, %s14
      %p169 = scmp.lt.s32.totalorder %s168, 63
      %s170 = scalar_select %p169, %s168, 63
      %s171 = smul.addr %s170, 8
      %s172 = scalar_lea.vmem %s3, %s171
      %s173 = smul.u32 16, %s14
      %v174 = vld [vmem:[%s166] sm:$0xff]
      %v175 = vld [vmem:[%s166 + $0x8] sm:$0xff]
      %v176 = vld [vmem:[%s166 + $0x10] sm:$0xff]
      %v177 = vld [vmem:[%s166 + $0x18] sm:$0xff]
      %v178 = vld [vmem:[%s166 + $0x20] sm:$0xff]
      %v179 = vld [vmem:[%s166 + $0x28] sm:$0xff]
      %v180 = vld [vmem:[%s166 + $0x30] sm:$0xff]
      %v181 = vld [vmem:[%s166 + $0x38] sm:$0xff]
      %v182 = vld [vmem:[%s166 + $0x40] sm:$0xff]
      %v183 = vld [vmem:[%s166 + $0x48] sm:$0xff]
      %v184 = vld [vmem:[%s166 + $0x50] sm:$0xff]
      %v185 = vld [vmem:[%s166 + $0x58] sm:$0xff]
      %v186 = vld [vmem:[%s166 + $0x60] sm:$0xff]
      %v187 = vld [vmem:[%s166 + $0x68] sm:$0xff]
      %v188 = vld [vmem:[%s166 + $0x70] sm:$0xff]
      %v189 = vld [vmem:[%s166 + $0x78] sm:$0xff]
      %v190 = vld [vmem:[%s1] sm:$0x1]
      %v192 = vlaneseq
      %v193 = vshrl.u32 %v192, 7
      %v194 = vsub.s32 0, %v193
      %v195 = vrot.slane %v190, %v194
      %v197 = vmul.f32 %v174, %v195
      %v198 = vmul.f32 %v175, %v195
      %v199 = vmul.f32 %v176, %v195
      %v200 = vmul.f32 %v177, %v195
      %v201 = vmul.f32 %v178, %v195
      %v202 = vmul.f32 %v179, %v195
      %v203 = vmul.f32 %v180, %v195
      %v204 = vmul.f32 %v181, %v195
      %v205 = vmul.f32 %v182, %v195
      %v206 = vmul.f32 %v183, %v195
      %v207 = vmul.f32 %v184, %v195
      %v208 = vmul.f32 %v185, %v195
      %v209 = vmul.f32 %v186, %v195
      %v210 = vmul.f32 %v187, %v195
      %v211 = vmul.f32 %v188, %v195
      %v212 = vmul.f32 %v189, %v195
      %v213 = vld [vmem:[%s2] sm:$0x1]
      %v215 = vlaneseq
      %v216 = vshrl.u32 %v215, 7
      %v217 = vsub.s32 0, %v216
      %v218 = vrot.slane %v213, %v217
      %v220 = vadd.f32 %v197, %v218
      %v221 = vadd.f32 %v198, %v218
      %v222 = vadd.f32 %v199, %v218
      %v223 = vadd.f32 %v200, %v218
      %v224 = vadd.f32 %v201, %v218
      %v225 = vadd.f32 %v202, %v218
      %v226 = vadd.f32 %v203, %v218
      %v227 = vadd.f32 %v204, %v218
      %v228 = vadd.f32 %v205, %v218
      %v229 = vadd.f32 %v206, %v218
      %v230 = vadd.f32 %v207, %v218
      %v231 = vadd.f32 %v208, %v218
      %v232 = vadd.f32 %v209, %v218
      %v233 = vadd.f32 %v210, %v218
      %v234 = vadd.f32 %v211, %v218
      %v235 = vadd.f32 %v212, %v218
      %v236 = vmax.f32 %v220, 0.0
      %v237 = vmax.f32 %v221, 0.0
      %v238 = vmax.f32 %v222, 0.0
      %v239 = vmax.f32 %v223, 0.0
      %v240 = vmax.f32 %v224, 0.0
      %v241 = vmax.f32 %v225, 0.0
      %v242 = vmax.f32 %v226, 0.0
      %v243 = vmax.f32 %v227, 0.0
      %v244 = vmax.f32 %v228, 0.0
      %v245 = vmax.f32 %v229, 0.0
      %v246 = vmax.f32 %v230, 0.0
      %v247 = vmax.f32 %v231, 0.0
      %v248 = vmax.f32 %v232, 0.0
      %v249 = vmax.f32 %v233, 0.0
      %v250 = vmax.f32 %v234, 0.0
      %v251 = vmax.f32 %v235, 0.0
      %vm252 = vcmask 261120
      %253 = vst.msk [vmem:[%s172] sm:$0xff] %vm252, %v236
      %254 = vst.msk [vmem:[%s172 + $0x8] sm:$0xff] %vm252, %v237
      %255 = vst.msk [vmem:[%s172 + $0x10] sm:$0xff] %vm252, %v238
      %256 = vst.msk [vmem:[%s172 + $0x18] sm:$0xff] %vm252, %v239
      %257 = vst.msk [vmem:[%s172 + $0x20] sm:$0xff] %vm252, %v240
      %258 = vst.msk [vmem:[%s172 + $0x28] sm:$0xff] %vm252, %v241
      %259 = vst.msk [vmem:[%s172 + $0x30] sm:$0xff] %vm252, %v242
      %260 = vst.msk [vmem:[%s172 + $0x38] sm:$0xff] %vm252, %v243
      %261 = vst.msk [vmem:[%s172 + $0x40] sm:$0xff] %vm252, %v244
      %262 = vst.msk [vmem:[%s172 + $0x48] sm:$0xff] %vm252, %v245
      %263 = vst.msk [vmem:[%s172 + $0x50] sm:$0xff] %vm252, %v246
      %264 = vst.msk [vmem:[%s172 + $0x58] sm:$0xff] %vm252, %v247
      %265 = vst.msk [vmem:[%s172 + $0x60] sm:$0xff] %vm252, %v248
      %266 = vst.msk [vmem:[%s172 + $0x68] sm:$0xff] %vm252, %v249
      %267 = vst.msk [vmem:[%s172 + $0x70] sm:$0xff] %vm252, %v250
      %268 = vst.msk [vmem:[%s172 + $0x78] sm:$0xff] %vm252, %v251
      %s269 = smul.u32 16, %s14
      %p270 = scmp.lt.s32.totalorder %s269, 63
      %s271 = scalar_select %p270, %s269, 63
      %s272 = smul.addr %s271, 8
      %s273 = scalar_lea.vmem %s3, %s272
      // Predicated region
      $region33: #{upsample_unit_forward.3} parent=31 // pred_check
        %p274 = pneg %p100
      $region34: #{upsample_unit_forward.3} parent=31 // pred_check_branch
        %276 = sbr.rel (%p274) target = $region36
      $region35: #{upsample_unit_forward.3} parent=31 // pred_region
        %s277 = smul.u32 16, %s14
      $region36: #{upsample_unit_forward.3} parent=31 // pred_fallthru
        _
    $region32: #{upsample_unit_forward.3} parent=5 // pred_fallthru
      _
    %p278 = scmp.le.s32.totalorder 2, %s9
    // Predicated region
    $region37: #{upsample_unit_forward.3} parent=5 // pred_check
      %p279 = pneg %p278
    $region38: #{upsample_unit_forward.3} parent=5 // pred_check_branch
      %281 = sbr.rel (%p279) target = $region40
    $region39: #{upsample_unit_forward.3} parent=5 // pred_region
      %s282 = ssub.s32 %s9, 2
      // Predicated region
      $region41: #{upsample_unit_forward.3} parent=39 // pred_check
        %p283 = pneg %p106
      $region42: #{upsample_unit_forward.3} parent=39 // pred_check_branch
        %285 = sbr.rel (%p283) target = $region44
      $region43: #{upsample_unit_forward.3} parent=39 // pred_region
        %s286 = smul.u32 16, %s15
        %p287 = scmp.lt.s32.totalorder %s286, 63
        %s288 = scalar_select %p287, %s286, 63
        %s289 = smul.addr %s288, 8
        %s290 = scalar_lea.vmem %s3, %s289
      $region44: #{upsample_unit_forward.3} parent=39 // pred_fallthru
        _
    $region40: #{upsample_unit_forward.3} parent=5 // pred_fallthru
      _
  $region6: #{upsample_unit_forward.3} parent=0 // loop_footer
    %s13 = sadd.s32 1, %s9
  $region7: #{upsample_unit_forward.3} parent=0 // loop_footer_branch
    %8 = sbr.rel target = $region3
  $region8: #{upsample_unit_forward.3} parent=0 // loop_exit
    _

</llo_original>
